<compile_context>
chip_gen: v7x
topology: tpu7x:2x2x1
jax: 0.10.0
libtpu: 0.0.40
codegen_flags: <defaults>
</compile_context>

<pallas_src>
import jax
import jax.numpy as jnp
from jax.experimental import pallas as pl
from jax.experimental.pallas import tpu as pltpu


# ----------------------------- config ---------------------------------------
class Config:
    HIDDEN_SIZE = 32
    VOCAB_SIZE = 64
    MAX_ANSWER_LENGTH = 8
    MIN_ANSWER_LENGTH = 1


NEG_INF = -1000000000.0
LANE = 128


def _round_up(x, m):
    return ((x + m - 1) // m) * m


def _softmax(x):
    # Exact softmax (divide).  The workload is overhead-bound, so there is no
    # benefit to the approximate EUP reciprocal and it costs accuracy.
    m = jnp.max(x, axis=-1, keepdims=True)
    e = jnp.exp(x - m)
    return e / jnp.sum(e, axis=-1, keepdims=True)


# ----------------------------- kernel ---------------------------------------
def qa_kernel(
    # inputs
    enc_ref,              # (BB, S, D)
    dec_ref,              # (BB, A, D)
    mask_ref,             # (BB, S) int32
    wc_ref, bc_ref,       # (D, D), (1, D)   context_projection
    wh_ref, bh_ref,       # (4, D), (4, 1)   [start ; end ; answer_type(2)]
    wa_ref, ba_ref,       # (D, D), (1, D)   answer_projection
    wv2_ref, bv2_ref,     # (D, 2V), (1, 2V) vocab_projection packed twice
    # outputs (lane-dense packed slabs)
    slab_ref,             # (BB, A, SLAB_W)  [vocab_logits | vocab_probs | attn | pad]
    misc_ref,             # (BB, MISC_W)     [start | end | at_logits | at_probs | pad]
):
    BB, S, D = enc_ref.shape
    A = dec_ref.shape[1]
    V2 = wv2_ref.shape[1]
    V = V2 // 2
    slab_w = slab_ref.shape[2]
    misc_w = misc_ref.shape[1]
    f32 = jnp.float32

    enc = enc_ref[...]                     # (BB, S, D)
    dec = dec_ref[...]                     # (BB, A, D)

    # ---- context projection (one MXU pass) ----------------------------------
    ctx = (
        jnp.dot(enc.reshape(BB * S, D), wc_ref[...], preferred_element_type=f32)
        + bc_ref[...]
    ).reshape(BB, S, D)                    # context_projection(encoder)

    # ---- start / end / answer-type heads: S lands in the lane dim -----------
    # (BB, 4, D) x (BB, S, D) -> (BB, 4, S); row 0 start, 1 end, 2:4 answer-type
    wh_b = jnp.broadcast_to(wh_ref[...], (BB,) + wh_ref.shape)
    heads = jnp.einsum("bkd,bsd->bks", wh_b, enc, preferred_element_type=f32)
    heads = heads + bh_ref[...].reshape(1, 4, 1)

    maskb = mask_ref[...] != 0                              # (BB, S)
    start = jnp.where(maskb, heads[:, 0, :], NEG_INF)       # masked_fill semantics
    end = jnp.where(maskb, heads[:, 1, :], NEG_INF)

    # mean over positions of (enc @ wat + bat) == mean-pooled-encoder @ wat + bat
    # (unmasked pooling, matching the reference module).
    atl = jnp.mean(heads[:, 2:4, :], axis=-1)               # (BB, 2)
    atp = _softmax(atl)

    # ---- OutputProcessingLayer(decoder_output, encoder_output) --------------
    ans = (
        jnp.dot(dec.reshape(BB * A, D), wa_ref[...], preferred_element_type=f32)
        + ba_ref[...]
    ).reshape(BB, A, D)                                      # answer_projection(decoder)

    scores = jnp.einsum("bad,bsd->bas", ans, ctx, preferred_element_type=f32)  # (BB,A,S)
    attn = _softmax(scores)
    attended = jnp.einsum("bas,bsd->bad", attn, ctx, preferred_element_type=f32)
    combined = dec + attended              # dropout(p=0.1) is identity at inference

    # ---- vocab head: doubled weight -> logits in both lane halves -----------
    wide = (
        jnp.dot(combined.reshape(BB * A, D), wv2_ref[...], preferred_element_type=f32)
        + bv2_ref[...]
    )                                       # (BB*A, 2V); both halves == vocab_logits
    m = jnp.max(wide, axis=-1, keepdims=True)        # == rowmax over V (halves identical)
    e = jnp.exp(wide - m)
    s = 0.5 * jnp.sum(e, axis=-1, keepdims=True)     # == sum over V
    probs = e / s
    lane = jax.lax.broadcasted_iota(jnp.int32, wide.shape, 1)
    vocab_pair = jnp.where(lane < V, wide, probs).reshape(BB, A, V2)  # [logits|probs]

    # ---- packed, lane-dense output slabs -------------------------------------
    slab_parts = [vocab_pair, attn]
    pad_v = slab_w - (V2 + S)
    if pad_v:
        slab_parts.append(jnp.zeros((BB, A, pad_v), f32))
    slab_ref[...] = jnp.concatenate(slab_parts, axis=-1)

    misc_parts = [start, end, atl, atp]
    pad_m = misc_w - (2 * S + 4)
    if pad_m:
        misc_parts.append(jnp.zeros((BB, pad_m), f32))
    misc_ref[...] = jnp.concatenate(misc_parts, axis=-1)


# ----------------------------- one-time weight packing ------------------------
def pack_params(params):
    """Pre-pack weights ONCE (hoisted out of the per-call jitted path)."""
    wh = jnp.concatenate(
        [params["ws"], params["we"], params["wat"].T], axis=0)          # (4, D)
    bh = jnp.concatenate(
        [params["bs"][0], params["be"][0], params["bat"][0]]).reshape(4, 1)
    wv2 = jnp.concatenate([params["wv"], params["wv"]], axis=1)         # (D, 2V)
    bv2 = jnp.concatenate([params["bv"], params["bv"]], axis=1)         # (1, 2V)
    return {
        "wc": params["wc"], "bc": params["bc"],
        "wh": wh, "bh": bh,
        "wa": params["wa"], "ba": params["ba"],
        "wv2": wv2, "bv2": bv2,
    }


def _pick_batch_block(B):
    """Whole batch in one grid step by default (overhead-bound shapes)."""
    try:
        kind = jax.devices()[0].device_kind.lower()
    except Exception:
        kind = ""
    if B % 256 == 0:
        return 128            # serving-scale: restore DMA/compute double-buffering
    if "v7" in kind and B % 16 == 0:
        return B // 2         # v7x: shard the batch grid across both TensorCores
    return B


# ----------------------------- wrapper ---------------------------------------
@jax.jit
def qa_output_generator(encoder_output, decoder_output, question_mask, packed):
    """encoder_output: [B,S,D] f32, decoder_output: [B,A,D] f32,
    question_mask: [B,1,1,S] bool, packed: output of pack_params."""
    B, S, D = encoder_output.shape
    A = decoder_output.shape[1]
    V = packed["wv2"].shape[1] // 2
    V2 = 2 * V

    mask_i32 = question_mask.reshape(B, S).astype(jnp.int32)

    SLAB_W = _round_up(V2 + S, LANE)          # [vocab_logits|vocab_probs|attn|pad]
    MISC_W = _round_up(2 * S + 4, LANE)       # [start|end|at_logits|at_probs|pad]

    BB = _pick_batch_block(B)
    nb = B // BB

    weights = (packed["wc"], packed["bc"], packed["wh"], packed["bh"],
               packed["wa"], packed["ba"], packed["wv2"], packed["bv2"])

    def _wspec(w):
        nd = w.ndim
        return pl.BlockSpec(w.shape, lambda i, _nd=nd: (0,) * _nd)

    in_specs = [
        pl.BlockSpec((BB, S, D), lambda i: (i, 0, 0)),   # encoder
        pl.BlockSpec((BB, A, D), lambda i: (i, 0, 0)),   # decoder
        pl.BlockSpec((BB, S), lambda i: (i, 0)),         # mask
    ] + [_wspec(w) for w in weights]

    out_shape = (
        jax.ShapeDtypeStruct((B, A, SLAB_W), jnp.float32),
        jax.ShapeDtypeStruct((B, MISC_W), jnp.float32),
    )
    out_specs = (
        pl.BlockSpec((BB, A, SLAB_W), lambda i: (i, 0, 0)),
        pl.BlockSpec((BB, MISC_W), lambda i: (i, 0)),
    )

    flops = 2 * B * (S * D * D + 4 * S * D + A * D * D + 2 * A * S * D + A * D * V2)
    transcendentals = B * (A * S + A * V2 + 2)
    bytes_accessed = 4 * (B * S * D + B * A * D + B * S
                          + sum(int(w.size) for w in weights)
                          + B * A * SLAB_W + B * MISC_W)

    slab, misc = pl.pallas_call(
        qa_kernel,
        out_shape=out_shape,
        grid=(nb,),
        in_specs=in_specs,
        out_specs=out_specs,
        compiler_params=pltpu.CompilerParams(dimension_semantics=("parallel",)),
        cost_estimate=pl.CostEstimate(flops=flops,
                                      transcendentals=transcendentals,
                                      bytes_accessed=bytes_accessed),
    )(encoder_output, decoder_output, mask_i32, *weights)

    return {
        "start_logits": misc[:, :S],
        "end_logits": misc[:, S:2 * S],
        "attention_weights": slab[..., V2:V2 + S],
        "vocab_logits": slab[..., :V],
        "vocab_probs": slab[..., V:V2],
        "answer_type_logits": misc[:, 2 * S:2 * S + 2],
        "answer_type_probs": misc[:, 2 * S + 2:2 * S + 4],
    }


# ----------------------------- reference (pure JAX) ---------------------------
def qa_reference(encoder_output, decoder_output, question_mask, params):
    B, S, D = encoder_output.shape
    mask = question_mask.reshape(B, S)

    start = jnp.einsum("bsd,d->bs", encoder_output, params["ws"][0]) + params["bs"][0, 0]
    end = jnp.einsum("bsd,d->bs", encoder_output, params["we"][0]) + params["be"][0, 0]
    start = jnp.where(mask, start, NEG_INF)
    end = jnp.where(mask, end, NEG_INF)

    ctx = encoder_output @ params["wc"] + params["bc"]
    ans = decoder_output @ params["wa"] + params["ba"]
    scores = jnp.einsum("bad,bsd->bas", ans, ctx)
    attn = jax.nn.softmax(scores, axis=-1)
    attended = jnp.einsum("bas,bsd->bad", attn, ctx)
    combined = decoder_output + attended
    vlog = combined @ params["wv"] + params["bv"]
    vprob = jax.nn.softmax(vlog, axis=-1)

    pooled = encoder_output.mean(axis=1)
    atl = pooled @ params["wat"] + params["bat"]
    atp = jax.nn.softmax(atl, axis=-1)
    return {
        "start_logits": start, "end_logits": end, "attention_weights": attn,
        "vocab_logits": vlog, "vocab_probs": vprob,
        "answer_type_logits": atl, "answer_type_probs": atp,
    }


# ----------------------------- params init -----------------------------------
def init_params(key, d_model, vocab_size):
    ks = jax.random.split(key, 6)
    scale = 1.0 / jnp.sqrt(jnp.float32(d_model))
    return {
        "wc": jax.random.normal(ks[0], (d_model, d_model), jnp.float32) * scale,
        "bc": jnp.full((1, d_model), 0.01, jnp.float32),
        "wa": jax.random.normal(ks[1], (d_model, d_model), jnp.float32) * scale,
        "ba": jnp.full((1, d_model), -0.01, jnp.float32),
        "wv": jax.random.normal(ks[2], (d_model, vocab_size), jnp.float32) * scale,
        "bv": jnp.zeros((1, vocab_size), jnp.float32),
        "ws": jax.random.normal(ks[3], (1, d_model), jnp.float32) * scale,
        "bs": jnp.zeros((1, 1), jnp.float32),
        "we": jax.random.normal(ks[4], (1, d_model), jnp.float32) * scale,
        "be": jnp.zeros((1, 1), jnp.float32),
        "wat": jax.random.normal(ks[5], (d_model, 2), jnp.float32) * scale,
        "bat": jnp.zeros((1, 2), jnp.float32),
    }


# ----------------------------- main ------------------------------------------
if __name__ == "__main__":
    cfg = Config()
    B, S, A = 2, 16, cfg.MAX_ANSWER_LENGTH
    D, V = cfg.HIDDEN_SIZE, cfg.VOCAB_SIZE

    key = jax.random.PRNGKey(0)
    k_enc, k_dec, k_par = jax.random.split(key, 3)

    encoder_output = jax.random.normal(k_enc, (B, S, D), jnp.float32)
    decoder_output = jax.random.normal(k_dec, (B, A, D), jnp.float32)
    # mask out the tail of the sequence for batch element 1
    question_mask = jnp.ones((B, 1, 1, S), dtype=bool).at[1, 0, 0, 12:].set(False)

    params = init_params(k_par, D, V)
    packed = pack_params(params)   # one-time packing, hoisted out of the per-call path

    outs = qa_output_generator(encoder_output, decoder_output, question_mask, packed)
    outs = jax.tree_util.tree_map(jax.block_until_ready, outs)

    ref = qa_reference(encoder_output, decoder_output, question_mask, params)
    for name, val in outs.items():
        assert val.shape == ref[name].shape, (name, val.shape, ref[name].shape)
        assert jnp.allclose(val, ref[name], atol=2e-4, rtol=2e-4), name

    print("KERNEL_OK")
</pallas_src>

<mosaic_0001>
module attributes {stable_mosaic.version = 11 : i64} {
  func.func @qa_kernel(%arg0: i32, %arg1: memref<2x16x32xf32, #tpu.memory_space<vmem>>, %arg2: memref<2x8x32xf32, #tpu.memory_space<vmem>>, %arg3: memref<2x16xi32, #tpu.memory_space<vmem>>, %arg4: memref<32x32xf32, #tpu.memory_space<vmem>>, %arg5: memref<1x32xf32, #tpu.memory_space<vmem>>, %arg6: memref<4x32xf32, #tpu.memory_space<vmem>>, %arg7: memref<4x1xf32, #tpu.memory_space<vmem>>, %arg8: memref<32x32xf32, #tpu.memory_space<vmem>>, %arg9: memref<1x32xf32, #tpu.memory_space<vmem>>, %arg10: memref<32x128xf32, #tpu.memory_space<vmem>>, %arg11: memref<1x128xf32, #tpu.memory_space<vmem>>, %arg12: memref<2x8x256xf32, #tpu.memory_space<vmem>>, %arg13: memref<2x128xf32, #tpu.memory_space<vmem>>) attributes {dimension_semantics = [#tpu.dimension_semantics<parallel>], iteration_bounds = array<i64: 1>, scalar_prefetch = 0 : i64, scratch_operands = 0 : i64, tpu.core_type = #tpu.core_type<tc>, window_params = [{transform_indices = @transform_0, window_bounds = array<i64: 2, 16, 32>}, {transform_indices = @transform_1, window_bounds = array<i64: 2, 8, 32>}, {transform_indices = @transform_2, window_bounds = array<i64: 2, 16>}, {pipeline_mode = #tpu.pipeline_mode<synchronous>, transform_indices = @transform_3, window_bounds = array<i64: 32, 32>}, {pipeline_mode = #tpu.pipeline_mode<synchronous>, transform_indices = @transform_4, window_bounds = array<i64: 1, 32>}, {pipeline_mode = #tpu.pipeline_mode<synchronous>, transform_indices = @transform_5, window_bounds = array<i64: 4, 32>}, {pipeline_mode = #tpu.pipeline_mode<synchronous>, transform_indices = @transform_6, window_bounds = array<i64: 4, 1>}, {pipeline_mode = #tpu.pipeline_mode<synchronous>, transform_indices = @transform_7, window_bounds = array<i64: 32, 32>}, {pipeline_mode = #tpu.pipeline_mode<synchronous>, transform_indices = @transform_8, window_bounds = array<i64: 1, 32>}, {pipeline_mode = #tpu.pipeline_mode<synchronous>, transform_indices = @transform_9, window_bounds = array<i64: 32, 128>}, {pipeline_mode = #tpu.pipeline_mode<synchronous>, transform_indices = @transform_10, window_bounds = array<i64: 1, 128>}, {transform_indices = @transform_11, window_bounds = array<i64: 2, 8, 256>}, {transform_indices = @transform_12, window_bounds = array<i64: 2, 128>}]} {
    %c0 = arith.constant 0 : index
    %c0_0 = arith.constant 0 : index
    %c0_1 = arith.constant 0 : index
    %0 = vector.load %arg1[%c0, %c0_0, %c0_1] : memref<2x16x32xf32, #tpu.memory_space<vmem>>, vector<2x16x32xf32>
    %c0_2 = arith.constant 0 : index
    %c0_3 = arith.constant 0 : index
    %c0_4 = arith.constant 0 : index
    %1 = vector.load %arg2[%c0_2, %c0_3, %c0_4] : memref<2x8x32xf32, #tpu.memory_space<vmem>>, vector<2x8x32xf32>
    %2 = vector.shape_cast %0 : vector<2x16x32xf32> to vector<32x32xf32>
    %c0_5 = arith.constant 0 : index
    %c0_6 = arith.constant 0 : index
    %3 = vector.load %arg4[%c0_5, %c0_6] : memref<32x32xf32, #tpu.memory_space<vmem>>, vector<32x32xf32>
    %cst = arith.constant dense<0.000000e+00> : vector<32x32xf32>
    %4 = tpu.matmul %2, %3, %cst {dimension_numbers = #tpu.dot_dimension_numbers<[1], [0], [0], [1], [0, 0, 1, 1], [], []>} : vector<32x32xf32>, vector<32x32xf32>, vector<32x32xf32> -> vector<32x32xf32>
    %c0_7 = arith.constant 0 : index
    %c0_8 = arith.constant 0 : index
    %5 = vector.load %arg5[%c0_7, %c0_8] : memref<1x32xf32, #tpu.memory_space<vmem>>, vector<1x32xf32>
    %6 = vector.broadcast %5 : vector<1x32xf32> to vector<32x32xf32>
    %7 = arith.addf %4, %6 : vector<32x32xf32>
    %8 = vector.shape_cast %7 : vector<32x32xf32> to vector<2x16x32xf32>
    %c0_9 = arith.constant 0 : index
    %c0_10 = arith.constant 0 : index
    %9 = vector.load %arg6[%c0_9, %c0_10] : memref<4x32xf32, #tpu.memory_space<vmem>>, vector<4x32xf32>
    %10 = vector.shape_cast %9 : vector<4x32xf32> to vector<1x4x32xf32>
    %11 = vector.broadcast %10 : vector<1x4x32xf32> to vector<2x4x32xf32>
    "tpu.trace_start"() <{level = 10 : i32, message = "bkd,bsd->bks"}> : () -> ()
    %cst_11 = arith.constant dense<0.000000e+00> : vector<2x4x16xf32>
    %12 = tpu.matmul %11, %0, %cst_11 {dimension_numbers = #tpu.dot_dimension_numbers<[2], [2], [1], [1], [0, 0, 0, 1, 1, 1], [0], [0]>} : vector<2x4x32xf32>, vector<2x16x32xf32>, vector<2x4x16xf32> -> vector<2x4x16xf32>
    "tpu.trace_stop"() : () -> ()
    %c0_12 = arith.constant 0 : index
    %c0_13 = arith.constant 0 : index
    %13 = vector.load %arg7[%c0_12, %c0_13] : memref<4x1xf32, #tpu.memory_space<vmem>>, vector<4x1xf32>
    %14 = vector.shape_cast %13 : vector<4x1xf32> to vector<1x4x1xf32>
    %15 = vector.broadcast %14 : vector<1x4x1xf32> to vector<2x4x16xf32>
    %16 = arith.addf %12, %15 : vector<2x4x16xf32>
    %c0_14 = arith.constant 0 : index
    %c0_15 = arith.constant 0 : index
    %17 = vector.load %arg3[%c0_14, %c0_15] : memref<2x16xi32, #tpu.memory_space<vmem>>, vector<2x16xi32>
    %c0_i32 = arith.constant 0 : i32
    %18 = vector.broadcast %c0_i32 : i32 to vector<2x16xi32>
    %19 = arith.cmpi ne, %17, %18 : vector<2x16xi32>
    %20 = vector.extract_strided_slice %16 {offsets = [0, 0, 0], sizes = [2, 1, 16], strides = [1, 1, 1]} : vector<2x4x16xf32> to vector<2x1x16xf32>
    %21 = vector.shape_cast %20 : vector<2x1x16xf32> to vector<2x16xf32>
    %cst_16 = arith.constant -1.000000e+09 : f32
    %22 = vector.broadcast %cst_16 : f32 to vector<2x16xf32>
    %23 = arith.select %19, %21, %22 : vector<2x16xi1>, vector<2x16xf32>
    %24 = vector.extract_strided_slice %16 {offsets = [0, 1, 0], sizes = [2, 1, 16], strides = [1, 1, 1]} : vector<2x4x16xf32> to vector<2x1x16xf32>
    %25 = vector.shape_cast %24 : vector<2x1x16xf32> to vector<2x16xf32>
    %cst_17 = arith.constant -1.000000e+09 : f32
    %26 = vector.broadcast %cst_17 : f32 to vector<2x16xf32>
    %27 = arith.select %19, %25, %26 : vector<2x16xi1>, vector<2x16xf32>
    %28 = vector.extract_strided_slice %16 {offsets = [0, 2, 0], sizes = [2, 2, 16], strides = [1, 1, 1]} : vector<2x4x16xf32> to vector<2x2x16xf32>
    %cst_18 = arith.constant dense<0.000000e+00> : vector<2x2xf32>
    %29 = vector.multi_reduction <add>, %28, %cst_18 [2] : vector<2x2x16xf32> to vector<2x2xf32>
    %cst_19 = arith.constant 1.600000e+01 : f32
    %30 = vector.broadcast %cst_19 : f32 to vector<2x2xf32>
    %31 = arith.divf %29, %30 : vector<2x2xf32>
    %cst_20 = arith.constant dense<0xFF800000> : vector<2xf32>
    %32 = vector.multi_reduction <maximumf>, %31, %cst_20 [1] : vector<2x2xf32> to vector<2xf32>
    %33 = vector.shape_cast %32 : vector<2xf32> to vector<2x1xf32>
    %34 = vector.broadcast %33 : vector<2x1xf32> to vector<2x2xf32>
    %35 = arith.subf %31, %34 : vector<2x2xf32>
    %36 = math.exp %35 : vector<2x2xf32>
    %cst_21 = arith.constant dense<0.000000e+00> : vector<2xf32>
    %37 = vector.multi_reduction <add>, %36, %cst_21 [1] : vector<2x2xf32> to vector<2xf32>
    %38 = vector.shape_cast %37 : vector<2xf32> to vector<2x1xf32>
    %39 = vector.broadcast %38 : vector<2x1xf32> to vector<2x2xf32>
    %40 = arith.divf %36, %39 : vector<2x2xf32>
    %41 = vector.shape_cast %1 : vector<2x8x32xf32> to vector<16x32xf32>
    %c0_22 = arith.constant 0 : index
    %c0_23 = arith.constant 0 : index
    %42 = vector.load %arg8[%c0_22, %c0_23] : memref<32x32xf32, #tpu.memory_space<vmem>>, vector<32x32xf32>
    %cst_24 = arith.constant dense<0.000000e+00> : vector<16x32xf32>
    %43 = tpu.matmul %41, %42, %cst_24 {dimension_numbers = #tpu.dot_dimension_numbers<[1], [0], [0], [1], [0, 0, 1, 1], [], []>} : vector<16x32xf32>, vector<32x32xf32>, vector<16x32xf32> -> vector<16x32xf32>
    %c0_25 = arith.constant 0 : index
    %c0_26 = arith.constant 0 : index
    %44 = vector.load %arg9[%c0_25, %c0_26] : memref<1x32xf32, #tpu.memory_space<vmem>>, vector<1x32xf32>
    %45 = vector.broadcast %44 : vector<1x32xf32> to vector<16x32xf32>
    %46 = arith.addf %43, %45 : vector<16x32xf32>
    %47 = vector.shape_cast %46 : vector<16x32xf32> to vector<2x8x32xf32>
    "tpu.trace_start"() <{level = 10 : i32, message = "bad,bsd->bas"}> : () -> ()
    %cst_27 = arith.constant dense<0.000000e+00> : vector<2x8x16xf32>
    %48 = tpu.matmul %47, %8, %cst_27 {dimension_numbers = #tpu.dot_dimension_numbers<[2], [2], [1], [1], [0, 0, 0, 1, 1, 1], [0], [0]>} : vector<2x8x32xf32>, vector<2x16x32xf32>, vector<2x8x16xf32> -> vector<2x8x16xf32>
    "tpu.trace_stop"() : () -> ()
    %cst_28 = arith.constant dense<0xFF800000> : vector<2x8xf32>
    %49 = vector.multi_reduction <maximumf>, %48, %cst_28 [2] : vector<2x8x16xf32> to vector<2x8xf32>
    %50 = vector.shape_cast %49 : vector<2x8xf32> to vector<2x8x1xf32>
    %51 = vector.broadcast %50 : vector<2x8x1xf32> to vector<2x8x16xf32>
    %52 = arith.subf %48, %51 : vector<2x8x16xf32>
    %53 = math.exp %52 : vector<2x8x16xf32>
    %cst_29 = arith.constant dense<0.000000e+00> : vector<2x8xf32>
    %54 = vector.multi_reduction <add>, %53, %cst_29 [2] : vector<2x8x16xf32> to vector<2x8xf32>
    %55 = vector.shape_cast %54 : vector<2x8xf32> to vector<2x8x1xf32>
    %56 = vector.broadcast %55 : vector<2x8x1xf32> to vector<2x8x16xf32>
    %57 = arith.divf %53, %56 : vector<2x8x16xf32>
    "tpu.trace_start"() <{level = 10 : i32, message = "bas,bsd->bad"}> : () -> ()
    %cst_30 = arith.constant dense<0.000000e+00> : vector<2x8x32xf32>
    %58 = tpu.matmul %57, %8, %cst_30 {dimension_numbers = #tpu.dot_dimension_numbers<[2], [1], [1], [2], [0, 0, 0, 1, 1, 2], [0], [0]>} : vector<2x8x16xf32>, vector<2x16x32xf32>, vector<2x8x32xf32> -> vector<2x8x32xf32>
    "tpu.trace_stop"() : () -> ()
    %59 = arith.addf %1, %58 : vector<2x8x32xf32>
    %60 = vector.shape_cast %59 : vector<2x8x32xf32> to vector<16x32xf32>
    %c0_31 = arith.constant 0 : index
    %c0_32 = arith.constant 0 : index
    %61 = vector.load %arg10[%c0_31, %c0_32] : memref<32x128xf32, #tpu.memory_space<vmem>>, vector<32x128xf32>
    %cst_33 = arith.constant dense<0.000000e+00> : vector<16x128xf32>
    %62 = tpu.matmul %60, %61, %cst_33 {dimension_numbers = #tpu.dot_dimension_numbers<[1], [0], [0], [1], [0, 0, 1, 1], [], []>} : vector<16x32xf32>, vector<32x128xf32>, vector<16x128xf32> -> vector<16x128xf32>
    %c0_34 = arith.constant 0 : index
    %c0_35 = arith.constant 0 : index
    %63 = vector.load %arg11[%c0_34, %c0_35] : memref<1x128xf32, #tpu.memory_space<vmem>>, vector<1x128xf32>
    %64 = vector.broadcast %63 : vector<1x128xf32> to vector<16x128xf32>
    %65 = arith.addf %62, %64 : vector<16x128xf32>
    %cst_36 = arith.constant dense<0xFF800000> : vector<16xf32>
    %66 = vector.multi_reduction <maximumf>, %65, %cst_36 [1] : vector<16x128xf32> to vector<16xf32>
    %67 = vector.shape_cast %66 : vector<16xf32> to vector<16x1xf32>
    %68 = vector.broadcast %67 : vector<16x1xf32> to vector<16x128xf32>
    %69 = arith.subf %65, %68 : vector<16x128xf32>
    %70 = math.exp %69 : vector<16x128xf32>
    %cst_37 = arith.constant dense<0.000000e+00> : vector<16xf32>
    %71 = vector.multi_reduction <add>, %70, %cst_37 [1] : vector<16x128xf32> to vector<16xf32>
    %72 = vector.shape_cast %71 : vector<16xf32> to vector<16x1xf32>
    %cst_38 = arith.constant 5.000000e-01 : f32
    %73 = vector.broadcast %cst_38 : f32 to vector<16x1xf32>
    %74 = arith.mulf %73, %72 : vector<16x1xf32>
    %75 = vector.broadcast %74 : vector<16x1xf32> to vector<16x128xf32>
    %76 = arith.divf %70, %75 : vector<16x128xf32>
    %77 = tpu.iota {dimensions = array<i32: 1>} : vector<16x128xi32>
    %c64_i32 = arith.constant 64 : i32
    %78 = vector.broadcast %c64_i32 : i32 to vector<16x128xi32>
    %79 = arith.cmpi slt, %77, %78 : vector<16x128xi32>
    %80 = arith.select %79, %65, %76 : vector<16x128xi1>, vector<16x128xf32>
    %81 = vector.shape_cast %80 : vector<16x128xf32> to vector<2x8x128xf32>
    %cst_39 = arith.constant 0.000000e+00 : f32
    %82 = vector.broadcast %cst_39 : f32 to vector<2x8x112xf32>
    %83 = tpu.concatenate %81, %57, %82 in 2 : vector<2x8x128xf32>, vector<2x8x16xf32>, vector<2x8x112xf32> -> vector<2x8x256xf32>
    %c0_40 = arith.constant 0 : index
    %c0_41 = arith.constant 0 : index
    %c0_42 = arith.constant 0 : index
    %84 = vector.load %arg12[%c0_40, %c0_41, %c0_42] : memref<2x8x256xf32, #tpu.memory_space<vmem>>, vector<2x8x256xf32>
    tpu.vector_store %arg12[%c0_40, %c0_41, %c0_42], %83 {strides = array<i32>} : memref<2x8x256xf32, #tpu.memory_space<vmem>>, vector<2x8x256xf32>,
    %cst_43 = arith.constant 0.000000e+00 : f32
    %85 = vector.broadcast %cst_43 : f32 to vector<2x92xf32>
    %86 = tpu.concatenate %23, %27, %31, %40, %85 in 1 : vector<2x16xf32>, vector<2x16xf32>, vector<2x2xf32>, vector<2x2xf32>, vector<2x92xf32> -> vector<2x128xf32>
    %c0_44 = arith.constant 0 : index
    %c0_45 = arith.constant 0 : index
    %87 = vector.load %arg13[%c0_44, %c0_45] : memref<2x128xf32, #tpu.memory_space<vmem>>, vector<2x128xf32>
    tpu.vector_store %arg13[%c0_44, %c0_45], %86 {strides = array<i32>} : memref<2x128xf32, #tpu.memory_space<vmem>>, vector<2x128xf32>,
    return
  }
  func.func @transform_0(%arg0: i32) -> (i32, i32, i32) {
    %c0_i32 = arith.constant 0 : i32
    %c0_i32_0 = arith.constant 0 : i32
    %c0_i32_1 = arith.constant 0 : i32
    return %arg0, %c0_i32, %c0_i32_0 : i32, i32, i32
  }
  func.func @transform_1(%arg0: i32) -> (i32, i32, i32) {
    %c0_i32 = arith.constant 0 : i32
    %c0_i32_0 = arith.constant 0 : i32
    %c0_i32_1 = arith.constant 0 : i32
    return %arg0, %c0_i32, %c0_i32_0 : i32, i32, i32
  }
  func.func @transform_2(%arg0: i32) -> (i32, i32) {
    %c0_i32 = arith.constant 0 : i32
    %c0_i32_0 = arith.constant 0 : i32
    return %arg0, %c0_i32 : i32, i32
  }
  func.func @transform_3(%arg0: i32) -> (i32, i32) {
    %c0_i32 = arith.constant 0 : i32
    %c0_i32_0 = arith.constant 0 : i32
    %c0_i32_1 = arith.constant 0 : i32
    return %c0_i32, %c0_i32_0 : i32, i32
  }
  func.func @transform_4(%arg0: i32) -> (i32, i32) {
    %c0_i32 = arith.constant 0 : i32
    %c0_i32_0 = arith.constant 0 : i32
    %c0_i32_1 = arith.constant 0 : i32
    return %c0_i32, %c0_i32_0 : i32, i32
  }
  func.func @transform_5(%arg0: i32) -> (i32, i32) {
    %c0_i32 = arith.constant 0 : i32
    %c0_i32_0 = arith.constant 0 : i32
    %c0_i32_1 = arith.constant 0 : i32
    return %c0_i32, %c0_i32_0 : i32, i32
  }
  func.func @transform_6(%arg0: i32) -> (i32, i32) {
    %c0_i32 = arith.constant 0 : i32
    %c0_i32_0 = arith.constant 0 : i32
    %c0_i32_1 = arith.constant 0 : i32
    return %c0_i32, %c0_i32_0 : i32, i32
  }
  func.func @transform_7(%arg0: i32) -> (i32, i32) {
    %c0_i32 = arith.constant 0 : i32
    %c0_i32_0 = arith.constant 0 : i32
    %c0_i32_1 = arith.constant 0 : i32
    return %c0_i32, %c0_i32_0 : i32, i32
  }
  func.func @transform_8(%arg0: i32) -> (i32, i32) {
    %c0_i32 = arith.constant 0 : i32
    %c0_i32_0 = arith.constant 0 : i32
    %c0_i32_1 = arith.constant 0 : i32
    return %c0_i32, %c0_i32_0 : i32, i32
  }
  func.func @transform_9(%arg0: i32) -> (i32, i32) {
    %c0_i32 = arith.constant 0 : i32
    %c0_i32_0 = arith.constant 0 : i32
    %c0_i32_1 = arith.constant 0 : i32
    return %c0_i32, %c0_i32_0 : i32, i32
  }
  func.func @transform_10(%arg0: i32) -> (i32, i32) {
    %c0_i32 = arith.constant 0 : i32
    %c0_i32_0 = arith.constant 0 : i32
    %c0_i32_1 = arith.constant 0 : i32
    return %c0_i32, %c0_i32_0 : i32, i32
  }
  func.func @transform_11(%arg0: i32) -> (i32, i32, i32) {
    %c0_i32 = arith.constant 0 : i32
    %c0_i32_0 = arith.constant 0 : i32
    %c0_i32_1 = arith.constant 0 : i32
    return %arg0, %c0_i32, %c0_i32_0 : i32, i32, i32
  }
  func.func @transform_12(%arg0: i32) -> (i32, i32) {
    %c0_i32 = arith.constant 0 : i32
    %c0_i32_0 = arith.constant 0 : i32
    return %arg0, %c0_i32 : i32, i32
  }
}

</mosaic_0001>

<llo_original>
// kernel: qa_output_generator.1
$region0: #{qa_output_generator.1}
  #allocation0 [shape = 'u32[]', space=smem, size = 0x4, offset = 0x4, fixed_abs, tag = 'smem constant byte address 0x4 - core index']
  #allocation1 [shape = 'u32[144,128]{1,0:T(1,128)}', space=vmem, size = 0x12000, scoped, tag = 'internal scratch']
  %s0 = inlined_call_operand.vmem [shape: f32[2,16,32], index: 0, kind: input, shape index: {}]
  %s1 = inlined_call_operand.hbm [shape: f32[2,8,32], index: 1, kind: input, shape index: {}]
  %s2 = inlined_call_operand.vmem [shape: s32[2,16], index: 2, kind: input, shape index: {}]
  %s3 = inlined_call_operand.hbm [shape: f32[32,32], index: 3, kind: input, shape index: {}]
  %s4 = inlined_call_operand.vmem [shape: f32[1,32], index: 4, kind: input, shape index: {}]
  %s5 = inlined_call_operand.hbm [shape: f32[4,32], index: 5, kind: input, shape index: {}]
  %s6 = inlined_call_operand.vmem [shape: f32[4,1], index: 6, kind: input, shape index: {}]
  %s7 = inlined_call_operand.hbm [shape: f32[32,32], index: 7, kind: input, shape index: {}]
  %s8 = inlined_call_operand.vmem [shape: f32[1,32], index: 8, kind: input, shape index: {}]
  %s9 = inlined_call_operand.hbm [shape: f32[32,128], index: 9, kind: input, shape index: {}]
  %s10 = inlined_call_operand.vmem [shape: f32[1,128], index: 10, kind: input, shape index: {}]
  %s11 = inlined_call_operand.vmem [shape: f32[2,8,256], index: 11, kind: output, shape index: {0}]
  %s12 = inlined_call_operand.vmem [shape: f32[2,128], index: 12, kind: output, shape index: {1}]
  %13 = xla_tuple %s11, %s12
  %s14 = sld [smem:[#allocation0]]
  $region82: #{qa_output_generator.1} parent=0
    _
  %s16 = ssub.s32 1, %s14
  %s17 = scalar_select 0, %s16, %s14
  $region1: #{qa_output_generator.1} parent=0
    #allocation2 [shape = 'u8[8192]{0}', space=vmem, size = 0x2000, scoped, tag = 'input window, operand 1, single buffered']
    #allocation3 [shape = 's32[1]{0}', space=sflag, size = 0x4, scoped, tag = 'scoped memory for qa_output_generator.1']
    #allocation4 [shape = 'u8[16384]{0}', space=vmem, size = 0x4000, scoped, tag = 'input window, operand 3, single buffered']
    #allocation5 [shape = 's32[1]{0}', space=sflag, size = 0x4, scoped, tag = 'scoped memory for qa_output_generator.1']
    #allocation6 [shape = 'u8[2048]{0}', space=vmem, size = 0x800, scoped, tag = 'input window, operand 5, single buffered']
    #allocation7 [shape = 'u8[16384]{0}', space=vmem, size = 0x4000, scoped, tag = 'input window, operand 7, single buffered']
    #allocation8 [shape = 's32[1]{0}', space=sflag, size = 0x4, scoped, tag = 'scoped memory for qa_output_generator.1']
    #allocation9 [shape = 'u8[16384]{0}', space=vmem, size = 0x4000, scoped, tag = 'input window, operand 9, single buffered']
    %18 = vsyncpa [#allocation3], 0
    %19 = vsyncpa [#allocation5], 0
    %20 = vsyncpa [#allocation8], 0
    // Predicated region
    $region2: #{qa_output_generator.1} parent=1 // pred_check
      _
    $region3: #{qa_output_generator.1} parent=1 // pred_check_branch
      %22 = sbr.rel (0) target = $region5
    $region4: #{qa_output_generator.1} parent=1 // pred_region
      _
    $region5: #{qa_output_generator.1} parent=1 // pred_fallthru
      _
    // Predicated region
    $region6: #{qa_output_generator.1} parent=1 // pred_check
      _
    $region7: #{qa_output_generator.1} parent=1 // pred_check_branch
      %24 = sbr.rel (0) target = $region9
    $region8: #{qa_output_generator.1} parent=1 // pred_region
      %s26 = ssub.s32 256, 256
      %27 = vsyncadd [#allocation3], %s26
      %s28 = sshll.u32 [#allocation2], 4
      %s29 = int_to_ptr.vmem [resolvable:$true] %s28
      %34 = dma.hbm_to_vmem [thread:$0]  %s1, 256, %s29, [#allocation3], 128, 128, 8
    $region9: #{qa_output_generator.1} parent=1 // pred_fallthru
      _
    // Predicated region
    $region10: #{qa_output_generator.1} parent=1 // pred_check
      _
    $region11: #{qa_output_generator.1} parent=1 // pred_check_branch
      %36 = sbr.rel (0) target = $region13
    $region12: #{qa_output_generator.1} parent=1 // pred_region
      _
    $region13: #{qa_output_generator.1} parent=1 // pred_fallthru
      _
    // Predicated region
    $region14: #{qa_output_generator.1} parent=1 // pred_check
      _
    $region15: #{qa_output_generator.1} parent=1 // pred_check_branch
      %38 = sbr.rel (0) target = $region17
    $region16: #{qa_output_generator.1} parent=1 // pred_region
      %s40 = ssub.s32 512, 512
      %41 = vsyncadd [#allocation5], %s40
      %s42 = sshll.u32 [#allocation4], 4
      %s43 = int_to_ptr.vmem [resolvable:$true] %s42
      %48 = dma.hbm_to_vmem [thread:$0]  %s3, 512, %s43, [#allocation5], 128, 128, 8
    $region17: #{qa_output_generator.1} parent=1 // pred_fallthru
      _
    // Predicated region
    $region18: #{qa_output_generator.1} parent=1 // pred_check
      _
    $region19: #{qa_output_generator.1} parent=1 // pred_check_branch
      %50 = sbr.rel (0) target = $region21
    $region20: #{qa_output_generator.1} parent=1 // pred_region
      _
    $region21: #{qa_output_generator.1} parent=1 // pred_fallthru
      _
    // Predicated region
    $region22: #{qa_output_generator.1} parent=1 // pred_check
      _
    $region23: #{qa_output_generator.1} parent=1 // pred_check_branch
      %52 = sbr.rel (0) target = $region25
    $region24: #{qa_output_generator.1} parent=1 // pred_region
      %s54 = ssub.s32 64, 64
      %55 = vsyncadd [#allocation5], %s54
      %s57 = sshll.u32 [#allocation6], 4
      %s58 = int_to_ptr.vmem [resolvable:$true] %s57
      %60 = dma.hbm_to_vmem [thread:$0]  %s5, 64, %s58, [#allocation5]
    $region25: #{qa_output_generator.1} parent=1 // pred_fallthru
      _
    // Predicated region
    $region26: #{qa_output_generator.1} parent=1 // pred_check
      _
    $region27: #{qa_output_generator.1} parent=1 // pred_check_branch
      %62 = sbr.rel (0) target = $region29
    $region28: #{qa_output_generator.1} parent=1 // pred_region
      _
    $region29: #{qa_output_generator.1} parent=1 // pred_fallthru
      _
    // Predicated region
    $region30: #{qa_output_generator.1} parent=1 // pred_check
      _
    $region31: #{qa_output_generator.1} parent=1 // pred_check_branch
      %64 = sbr.rel (0) target = $region33
    $region32: #{qa_output_generator.1} parent=1 // pred_region
      %s66 = ssub.s32 512, 512
      %67 = vsyncadd [#allocation8], %s66
      %s68 = sshll.u32 [#allocation7], 4
      %s69 = int_to_ptr.vmem [resolvable:$true] %s68
      %74 = dma.hbm_to_vmem [thread:$0]  %s7, 512, %s69, [#allocation8], 128, 128, 8
    $region33: #{qa_output_generator.1} parent=1 // pred_fallthru
      _
    // Predicated region
    $region34: #{qa_output_generator.1} parent=1 // pred_check
      _
    $region35: #{qa_output_generator.1} parent=1 // pred_check_branch
      %76 = sbr.rel (0) target = $region37
    $region36: #{qa_output_generator.1} parent=1 // pred_region
      _
    $region37: #{qa_output_generator.1} parent=1 // pred_fallthru
      _
    // Predicated region
    $region38: #{qa_output_generator.1} parent=1 // pred_check
      _
    $region39: #{qa_output_generator.1} parent=1 // pred_check_branch
      %78 = sbr.rel (0) target = $region41
    $region40: #{qa_output_generator.1} parent=1 // pred_region
      %s80 = ssub.s32 512, 512
      %81 = vsyncadd [#allocation8], %s80
      %s82 = sshll.u32 [#allocation9], 4
      %s83 = int_to_ptr.vmem [resolvable:$true] %s82
      %88 = dma.hbm_to_vmem [thread:$0]  %s9, 512, %s83, [#allocation8], 128, 128, 8
    $region41: #{qa_output_generator.1} parent=1 // pred_fallthru
      _
    // Predicated region
    $region42: #{qa_output_generator.1} parent=1 // pred_check
      _
    $region43: #{qa_output_generator.1} parent=1 // pred_check_branch
      %90 = sbr.rel (0) target = $region45
    $region44: #{qa_output_generator.1} parent=1 // pred_region
      _
    $region45: #{qa_output_generator.1} parent=1 // pred_fallthru
      _
    // Predicated region
    $region46: #{qa_output_generator.1} parent=1 // pred_check
      _
    $region47: #{qa_output_generator.1} parent=1 // pred_check_branch
      %92 = sbr.rel (0) target = $region49
    $region48: #{qa_output_generator.1} parent=1 // pred_region
      %93 = dma.done [#allocation3], 256
    $region49: #{qa_output_generator.1} parent=1 // pred_fallthru
      _
    // Predicated region
    $region50: #{qa_output_generator.1} parent=1 // pred_check
      _
    $region51: #{qa_output_generator.1} parent=1 // pred_check_branch
      %95 = sbr.rel (0) target = $region53
    $region52: #{qa_output_generator.1} parent=1 // pred_region
      %96 = dma.done [#allocation5], 512
    $region53: #{qa_output_generator.1} parent=1 // pred_fallthru
      _
    // Predicated region
    $region54: #{qa_output_generator.1} parent=1 // pred_check
      _
    $region55: #{qa_output_generator.1} parent=1 // pred_check_branch
      %98 = sbr.rel (0) target = $region57
    $region56: #{qa_output_generator.1} parent=1 // pred_region
      %99 = dma.done [#allocation5], 64
    $region57: #{qa_output_generator.1} parent=1 // pred_fallthru
      _
    // Predicated region
    $region58: #{qa_output_generator.1} parent=1 // pred_check
      _
    $region59: #{qa_output_generator.1} parent=1 // pred_check_branch
      %101 = sbr.rel (0) target = $region61
    $region60: #{qa_output_generator.1} parent=1 // pred_region
      %102 = dma.done [#allocation8], 512
    $region61: #{qa_output_generator.1} parent=1 // pred_fallthru
      _
    // Predicated region
    $region62: #{qa_output_generator.1} parent=1 // pred_check
      _
    $region63: #{qa_output_generator.1} parent=1 // pred_check_branch
      %104 = sbr.rel (0) target = $region65
    $region64: #{qa_output_generator.1} parent=1 // pred_region
      %105 = dma.done [#allocation8], 512
    $region65: #{qa_output_generator.1} parent=1 // pred_fallthru
      _
    %v106 = vld [vmem:[%s0] sm:$0xff]
    %v107 = vld [vmem:[%s0 + $0x8] sm:$0xff]
    %v108 = vld [vmem:[%s0 + $0x10] sm:$0xff]
    %v109 = vld [vmem:[%s0 + $0x18] sm:$0xff]
    %v110 = vld [vmem:[#allocation2] sm:$0xff]
    %v111 = vld [vmem:[#allocation2 + $0x8] sm:$0xff]
    %v112 = vld [vmem:[#allocation4] sm:$0xff]
    %v113 = vld [vmem:[#allocation4 + $0x8] sm:$0xff]
    %v114 = vld [vmem:[#allocation4 + $0x10] sm:$0xff]
    %v115 = vld [vmem:[#allocation4 + $0x18] sm:$0xff]
    %v116 = vld [vmem:[%s4] sm:$0x1]
    %v118 = vlaneseq
    %v119 = vshrl.u32 %v118, 7
    %v120 = vsub.s32 0, %v119
    %v121 = vrot.slane %v116, %v120
    %vm123 = vcmask 261120
    %v125 = vsel %vm123, %v106, 0
    %v128 = vsel %vm123, %v107, 0
    %v131 = vsel %vm123, %v108, 0
    %v134 = vsel %vm123, %v109, 0
    %136 = vmatprep.subr.mxu0 0.0
    %137 = vmatpush1.msra.mxu0 %v112
    %138 = vmatprep.subr.mxu0 0.0
    %139 = vmatpush1.msra.mxu0 %v113
    %140 = vmatprep.subr.mxu0 0.0
    %141 = vmatpush1.msra.mxu0 %v114
    %142 = vmatprep.subr.mxu0 0.0
    %143 = vmatpush1.msra.mxu0 %v115
    %144 = vmatprep.subr.mxu0 0.0
    %145 = vmatpush1.msra.mxu0 0.0
    %146 = vmatprep.subr.mxu0 0.0
    %147 = vmatpush1.msra.mxu0 0.0
    %148 = vmatprep.subr.mxu0 0.0
    %149 = vmatpush1.msra.mxu0 0.0
    %150 = vmatprep.subr.mxu0 0.0
    %151 = vmatpush1.msra.mxu0 0.0
    %152 = vmatprep.subr.mxu0 0.0
    %153 = vmatpush1.msra.mxu0 0.0
    %154 = vmatprep.subr.mxu0 0.0
    %155 = vmatpush1.msra.mxu0 0.0
    %156 = vmatprep.subr.mxu0 0.0
    %157 = vmatpush1.msra.mxu0 0.0
    %158 = vmatprep.subr.mxu0 0.0
    %159 = vmatpush1.msra.mxu0 0.0
    %160 = vmatprep.subr.mxu0 0.0
    %161 = vmatpush1.msra.mxu0 0.0
    %162 = vmatprep.subr.mxu0 0.0
    %163 = vmatpush1.msra.mxu0 0.0
    %164 = vmatprep.subr.mxu0 0.0
    %165 = vmatpush1.msra.mxu0 0.0
    %166 = vmatprep.subr.mxu0 0.0
    %167 = vmatpush1.msra.mxu0 0.0
    %168 = vmatprep.subr.mxu0 0.0
    %169 = vmatpush1.msra.mxu0 0.0
    %170 = vmatprep.subr.mxu0 0.0
    %171 = vmatpush1.msra.mxu0 0.0
    %172 = vmatprep.subr.mxu0 0.0
    %173 = vmatpush1.msra.mxu0 0.0
    %174 = vmatprep.subr.mxu0 0.0
    %175 = vmatpush1.msra.mxu0 0.0
    %176 = vmatprep.subr.mxu0 0.0
    %177 = vmatpush1.msra.mxu0 0.0
    %178 = vmatprep.subr.mxu0 0.0
    %179 = vmatpush1.msra.mxu0 0.0
    %180 = vmatprep.subr.mxu0 0.0
    %181 = vmatpush1.msra.mxu0 0.0
    %182 = vmatprep.subr.mxu0 0.0
    %183 = vmatpush1.msra.mxu0 0.0
    %184 = vmatprep.subr.mxu0 0.0
    %185 = vmatpush1.msra.mxu0 0.0
    %186 = vmatprep.subr.mxu0 0.0
    %187 = vmatpush1.msra.mxu0 0.0
    %188 = vmatprep.subr.mxu0 0.0
    %189 = vmatpush1.msra.mxu0 0.0
    %190 = vmatprep.subr.mxu0 0.0
    %191 = vmatpush1.msra.mxu0 0.0
    %192 = vmatprep.subr.mxu0 0.0
    %193 = vmatpush1.msra.mxu0 0.0
    %194 = vmatprep.subr.mxu0 0.0
    %195 = vmatpush1.msra.mxu0 0.0
    %196 = vmatprep.subr.mxu0 0.0
    %197 = vmatpush1.msra.mxu0 0.0
    %198 = vmatprep.subr.mxu0 0.0
    %199 = vmatpush1.msra.mxu0 0.0
    %200 = vmatprep.mubr.f32.mxu0 0.0
    %201 = vmatmul.mubr.f32.gmra.mrb[0].mxu0 %v125
    %v202 = vpop.f32.mrb[0].mxu0
    %v203 = vadd.f32 %v121, %v202
    %v204 = vpop.f32.mrb[0].mxu0
    %205 = vmatprep.mubr.f32.mxu0 0.0
    %206 = vmatmul.mubr.f32.gmra.mrb[0].mxu0 %v128
    %v207 = vpop.f32.mrb[0].mxu0
    %v208 = vadd.f32 %v121, %v207
    %v209 = vpop.f32.mrb[0].mxu0
    %210 = vmatprep.mubr.f32.mxu0 0.0
    %211 = vmatmul.mubr.f32.gmra.mrb[0].mxu0 %v131
    %v212 = vpop.f32.mrb[0].mxu0
    %v213 = vadd.f32 %v121, %v212
    %v214 = vpop.f32.mrb[0].mxu0
    %215 = vmatprep.mubr.f32.mxu0 0.0
    %216 = vmatmul.mubr.f32.gmra.mrb[0].mxu0 %v134
    %v217 = vpop.f32.mrb[0].mxu0
    %v218 = vadd.f32 %v121, %v217
    %v219 = vpop.f32.mrb[0].mxu0
    %220 = vdwg.mxu0
    %v221 = vld [vmem:[#allocation6] sm:$0xf]
    %v222 = vld [vmem:[%s6] sm:$0xf]
    %224 = vset.pattern.permute.xlu0 0
    %225 = vperm.xlu0 %224, %v222
    %v226 = vpop.permute.xlu0 %225
    %v229 = vsel %vm123, %v221, 0
    %231 = vmatprep.subr.mxu0 0.0
    %232 = vmatpush1.xpose.msra.mxu0 %v125
    %233 = vmatprep.subr.mxu0 0.0
    %234 = vmatpush1.xpose.msra.mxu0 %v128
    %235 = vmatprep.subr.mxu0 0.0
    %236 = vmatpush1.xpose.msra.mxu0 0.0
    %237 = vmatprep.subr.mxu0 0.0
    %238 = vmatpush1.xpose.msra.mxu0 0.0
    %239 = vmatprep.subr.mxu0 0.0
    %240 = vmatpush1.xpose.msra.mxu0 0.0
    %241 = vmatprep.subr.mxu0 0.0
    %242 = vmatpush1.xpose.msra.mxu0 0.0
    %243 = vmatprep.subr.mxu0 0.0
    %244 = vmatpush1.xpose.msra.mxu0 0.0
    %245 = vmatprep.subr.mxu0 0.0
    %246 = vmatpush1.xpose.msra.mxu0 0.0
    %247 = vmatprep.subr.mxu0 0.0
    %248 = vmatpush1.xpose.msra.mxu0 0.0
    %249 = vmatprep.subr.mxu0 0.0
    %250 = vmatpush1.xpose.msra.mxu0 0.0
    %251 = vmatprep.subr.mxu0 0.0
    %252 = vmatpush1.xpose.msra.mxu0 0.0
    %253 = vmatprep.subr.mxu0 0.0
    %254 = vmatpush1.xpose.msra.mxu0 0.0
    %255 = vmatprep.subr.mxu0 0.0
    %256 = vmatpush1.xpose.msra.mxu0 0.0
    %257 = vmatprep.subr.mxu0 0.0
    %258 = vmatpush1.xpose.msra.mxu0 0.0
    %259 = vmatprep.subr.mxu0 0.0
    %260 = vmatpush1.xpose.msra.mxu0 0.0
    %261 = vmatprep.subr.mxu0 0.0
    %262 = vmatpush1.xpose.msra.mxu0 0.0
    %263 = vmatprep.subr.mxu0 0.0
    %264 = vmatpush1.xpose.msra.mxu0 0.0
    %265 = vmatprep.subr.mxu0 0.0
    %266 = vmatpush1.xpose.msra.mxu0 0.0
    %267 = vmatprep.subr.mxu0 0.0
    %268 = vmatpush1.xpose.msra.mxu0 0.0
    %269 = vmatprep.subr.mxu0 0.0
    %270 = vmatpush1.xpose.msra.mxu0 0.0
    %271 = vmatprep.subr.mxu0 0.0
    %272 = vmatpush1.xpose.msra.mxu0 0.0
    %273 = vmatprep.subr.mxu0 0.0
    %274 = vmatpush1.xpose.msra.mxu0 0.0
    %275 = vmatprep.subr.mxu0 0.0
    %276 = vmatpush1.xpose.msra.mxu0 0.0
    %277 = vmatprep.subr.mxu0 0.0
    %278 = vmatpush1.xpose.msra.mxu0 0.0
    %279 = vmatprep.subr.mxu0 0.0
    %280 = vmatpush1.xpose.msra.mxu0 0.0
    %281 = vmatprep.subr.mxu0 0.0
    %282 = vmatpush1.xpose.msra.mxu0 0.0
    %283 = vmatprep.subr.mxu0 0.0
    %284 = vmatpush1.xpose.msra.mxu0 0.0
    %285 = vmatprep.subr.mxu0 0.0
    %286 = vmatpush1.xpose.msra.mxu0 0.0
    %287 = vmatprep.subr.mxu0 0.0
    %288 = vmatpush1.xpose.msra.mxu0 0.0
    %289 = vmatprep.subr.mxu0 0.0
    %290 = vmatpush1.xpose.msra.mxu0 0.0
    %291 = vmatprep.subr.mxu0 0.0
    %292 = vmatpush1.xpose.msra.mxu0 0.0
    %293 = vmatprep.subr.mxu0 0.0
    %294 = vmatpush1.xpose.msra.mxu0 0.0
    %295 = vmatprep.mubr.f32.mxu0 0.0
    %296 = vmatmul.mubr.f32.gmra.mrb[0].mxu0 %v229
    %v297 = vpop.f32.mrb[0].mxu0
    %v298 = vadd.f32 %v226, %v297
    %v299 = vpop.f32.mrb[0].mxu0
    %300 = vdwg.mxu0
    %301 = vmatprep.subr.mxu0 0.0
    %302 = vmatpush1.xpose.msra.mxu0 %v131
    %303 = vmatprep.subr.mxu0 0.0
    %304 = vmatpush1.xpose.msra.mxu0 %v134
    %305 = vmatprep.subr.mxu0 0.0
    %306 = vmatpush1.xpose.msra.mxu0 0.0
    %307 = vmatprep.subr.mxu0 0.0
    %308 = vmatpush1.xpose.msra.mxu0 0.0
    %309 = vmatprep.subr.mxu0 0.0
    %310 = vmatpush1.xpose.msra.mxu0 0.0
    %311 = vmatprep.subr.mxu0 0.0
    %312 = vmatpush1.xpose.msra.mxu0 0.0
    %313 = vmatprep.subr.mxu0 0.0
    %314 = vmatpush1.xpose.msra.mxu0 0.0
    %315 = vmatprep.subr.mxu0 0.0
    %316 = vmatpush1.xpose.msra.mxu0 0.0
    %317 = vmatprep.subr.mxu0 0.0
    %318 = vmatpush1.xpose.msra.mxu0 0.0
    %319 = vmatprep.subr.mxu0 0.0
    %320 = vmatpush1.xpose.msra.mxu0 0.0
    %321 = vmatprep.subr.mxu0 0.0
    %322 = vmatpush1.xpose.msra.mxu0 0.0
    %323 = vmatprep.subr.mxu0 0.0
    %324 = vmatpush1.xpose.msra.mxu0 0.0
    %325 = vmatprep.subr.mxu0 0.0
    %326 = vmatpush1.xpose.msra.mxu0 0.0
    %327 = vmatprep.subr.mxu0 0.0
    %328 = vmatpush1.xpose.msra.mxu0 0.0
    %329 = vmatprep.subr.mxu0 0.0
    %330 = vmatpush1.xpose.msra.mxu0 0.0
    %331 = vmatprep.subr.mxu0 0.0
    %332 = vmatpush1.xpose.msra.mxu0 0.0
    %333 = vmatprep.subr.mxu0 0.0
    %334 = vmatpush1.xpose.msra.mxu0 0.0
    %335 = vmatprep.subr.mxu0 0.0
    %336 = vmatpush1.xpose.msra.mxu0 0.0
    %337 = vmatprep.subr.mxu0 0.0
    %338 = vmatpush1.xpose.msra.mxu0 0.0
    %339 = vmatprep.subr.mxu0 0.0
    %340 = vmatpush1.xpose.msra.mxu0 0.0
    %341 = vmatprep.subr.mxu0 0.0
    %342 = vmatpush1.xpose.msra.mxu0 0.0
    %343 = vmatprep.subr.mxu0 0.0
    %344 = vmatpush1.xpose.msra.mxu0 0.0
    %345 = vmatprep.subr.mxu0 0.0
    %346 = vmatpush1.xpose.msra.mxu0 0.0
    %347 = vmatprep.subr.mxu0 0.0
    %348 = vmatpush1.xpose.msra.mxu0 0.0
    %349 = vmatprep.subr.mxu0 0.0
    %350 = vmatpush1.xpose.msra.mxu0 0.0
    %351 = vmatprep.subr.mxu0 0.0
    %352 = vmatpush1.xpose.msra.mxu0 0.0
    %353 = vmatprep.subr.mxu0 0.0
    %354 = vmatpush1.xpose.msra.mxu0 0.0
    %355 = vmatprep.subr.mxu0 0.0
    %356 = vmatpush1.xpose.msra.mxu0 0.0
    %357 = vmatprep.subr.mxu0 0.0
    %358 = vmatpush1.xpose.msra.mxu0 0.0
    %359 = vmatprep.subr.mxu0 0.0
    %360 = vmatpush1.xpose.msra.mxu0 0.0
    %361 = vmatprep.subr.mxu0 0.0
    %362 = vmatpush1.xpose.msra.mxu0 0.0
    %363 = vmatprep.subr.mxu0 0.0
    %364 = vmatpush1.xpose.msra.mxu0 0.0
    %365 = vmatprep.mubr.f32.mxu0 0.0
    %366 = vmatmul.mubr.f32.gmra.mrb[0].mxu0 %v229
    %v367 = vpop.f32.mrb[0].mxu0
    %v368 = vadd.f32 %v226, %v367
    %v369 = vpop.f32.mrb[0].mxu0
    %370 = vdwg.mxu0
    %v371 = vld [vmem:[%s2] sm:$0x3]
    %vm372 = vcmp.ne.s32.totalorder %v371, 0
    %v375 = vrot.slane %v368, 7
    %vm376 = vcmask 1041409
    %v377 = vsel %vm376, %v375, %v298
    %v379 = vsel %vm372, %v377, -1e+09
    %v380 = vrot.slane %v298, 1
    %v381 = vsel %vm376, %v368, %v380
    %v383 = vsel %vm372, %v381, -1e+09
    %vm384 = vcmask 125954
    %v385 = vsel %vm384, %v298, 0.0
    %386 = vadd.xlane.f32.xlu0 %v385
    %v387 = vpop.xlane.xlu0 %386
    %v388 = vsel %vm384, %v368, 0.0
    %389 = vadd.xlane.f32.xlu0 %v388
    %v390 = vpop.xlane.xlu0 %389
    %v391 = vrcp.pop 16.0
    %v392 = vmul.f32 %v387, %v391
    %v393 = vmul.f32 %v390, %v391
    %v396 = vlaneseq
    %v397 = vand.u32 %v396, 127
    %v398 = vlaneseq
    %v399 = vshrl.u32 %v398, 7
    %v400 = vsub.s32 %v397, %v399
    %v401 = vrot.slane %v392, %v400
    %v402 = vlaneseq
    %v403 = vshrl.u32 %v402, 7
    %v404 = vsub.s32 %v397, %v403
    %v405 = vrot.slane %v393, %v404
    %v406 = vsel %vm376, %v405, %v401
    %vm408 = vcmask 25616
    %v409 = vsel %vm408, %v406, -inf
    %410 = vmax.xlane.f32.xlu0 %v409
    %v411 = vpop.xlane.xlu0 %410
    %v413 = vlaneseq
    %v414 = vshrl.u32 %v413, 7
    %v415 = vsub.s32 0, %v414
    %v416 = vrot.slane %v411, %v415
    %v417 = vlaneseq
    %v418 = vshrl.u32 %v417, 7
    %v419 = vsub.s32 1, %v418
    %v420 = vrot.slane %v411, %v419
    %v423 = vsub.f32 %v392, %v416
    %v424 = vsub.f32 %v393, %v420
    %v425 = vmul.f32 %v423, 1.442695
    %v426 = vpow.pop %v425
    %v427 = vmul.f32 %v424, 1.442695
    %v428 = vpow.pop %v427
    %431 = vset.pattern.permute.xlu0 0
    %432 = vperm.xlu0 %431, %v426
    %v433 = vpop.permute.xlu0 %432
    %434 = vset.pattern.permute.xlu0 0
    %435 = vperm.xlu0 %434, %v428
    %v436 = vpop.permute.xlu0 %435
    %v437 = vadd.s32 %v397, 2
    %v438 = vlaneseq
    %v439 = vshrl.u32 %v438, 7
    %v440 = vsub.s32 %v437, %v439
    %v441 = vrot.slane %v433, %v440
    %v442 = vlaneseq
    %v443 = vshrl.u32 %v442, 7
    %v444 = vsub.s32 %v437, %v443
    %v445 = vrot.slane %v436, %v444
    %v446 = vsel %vm376, %v445, %v441
    %vm448 = vcmask 9216
    %v449 = vsel %vm448, %v446, 0.0
    %450 = vadd.xlane.f32.xlu0 %v449
    %v451 = vpop.xlane.xlu0 %450
    %v453 = vlaneseq
    %v454 = vshrl.u32 %v453, 7
    %v455 = vsub.s32 0, %v454
    %v456 = vrot.slane %v451, %v455
    %v457 = vlaneseq
    %v458 = vshrl.u32 %v457, 7
    %v459 = vsub.s32 1, %v458
    %v460 = vrot.slane %v451, %v459
    %v463 = vrcp.pop %v456
    %v464 = vmul.f32 %v426, %v463
    %v465 = vrcp.pop %v460
    %v466 = vmul.f32 %v428, %v465
    %v467 = vld [vmem:[#allocation7] sm:$0xff]
    %v468 = vld [vmem:[#allocation7 + $0x8] sm:$0xff]
    %v469 = vld [vmem:[#allocation7 + $0x10] sm:$0xff]
    %v470 = vld [vmem:[#allocation7 + $0x18] sm:$0xff]
    %v471 = vld [vmem:[%s8] sm:$0x1]
    %v473 = vlaneseq
    %v474 = vshrl.u32 %v473, 7
    %v475 = vsub.s32 0, %v474
    %v476 = vrot.slane %v471, %v475
    %v479 = vsel %vm123, %v110, 0
    %v482 = vsel %vm123, %v111, 0
    %484 = vmatprep.subr.mxu0 0.0
    %485 = vmatpush1.msra.mxu0 %v467
    %486 = vmatprep.subr.mxu0 0.0
    %487 = vmatpush1.msra.mxu0 %v468
    %488 = vmatprep.subr.mxu0 0.0
    %489 = vmatpush1.msra.mxu0 %v469
    %490 = vmatprep.subr.mxu0 0.0
    %491 = vmatpush1.msra.mxu0 %v470
    %492 = vmatprep.subr.mxu0 0.0
    %493 = vmatpush1.msra.mxu0 0.0
    %494 = vmatprep.subr.mxu0 0.0
    %495 = vmatpush1.msra.mxu0 0.0
    %496 = vmatprep.subr.mxu0 0.0
    %497 = vmatpush1.msra.mxu0 0.0
    %498 = vmatprep.subr.mxu0 0.0
    %499 = vmatpush1.msra.mxu0 0.0
    %500 = vmatprep.subr.mxu0 0.0
    %501 = vmatpush1.msra.mxu0 0.0
    %502 = vmatprep.subr.mxu0 0.0
    %503 = vmatpush1.msra.mxu0 0.0
    %504 = vmatprep.subr.mxu0 0.0
    %505 = vmatpush1.msra.mxu0 0.0
    %506 = vmatprep.subr.mxu0 0.0
    %507 = vmatpush1.msra.mxu0 0.0
    %508 = vmatprep.subr.mxu0 0.0
    %509 = vmatpush1.msra.mxu0 0.0
    %510 = vmatprep.subr.mxu0 0.0
    %511 = vmatpush1.msra.mxu0 0.0
    %512 = vmatprep.subr.mxu0 0.0
    %513 = vmatpush1.msra.mxu0 0.0
    %514 = vmatprep.subr.mxu0 0.0
    %515 = vmatpush1.msra.mxu0 0.0
    %516 = vmatprep.subr.mxu0 0.0
    %517 = vmatpush1.msra.mxu0 0.0
    %518 = vmatprep.subr.mxu0 0.0
    %519 = vmatpush1.msra.mxu0 0.0
    %520 = vmatprep.subr.mxu0 0.0
    %521 = vmatpush1.msra.mxu0 0.0
    %522 = vmatprep.subr.mxu0 0.0
    %523 = vmatpush1.msra.mxu0 0.0
    %524 = vmatprep.subr.mxu0 0.0
    %525 = vmatpush1.msra.mxu0 0.0
    %526 = vmatprep.subr.mxu0 0.0
    %527 = vmatpush1.msra.mxu0 0.0
    %528 = vmatprep.subr.mxu0 0.0
    %529 = vmatpush1.msra.mxu0 0.0
    %530 = vmatprep.subr.mxu0 0.0
    %531 = vmatpush1.msra.mxu0 0.0
    %532 = vmatprep.subr.mxu0 0.0
    %533 = vmatpush1.msra.mxu0 0.0
    %534 = vmatprep.subr.mxu0 0.0
    %535 = vmatpush1.msra.mxu0 0.0
    %536 = vmatprep.subr.mxu0 0.0
    %537 = vmatpush1.msra.mxu0 0.0
    %538 = vmatprep.subr.mxu0 0.0
    %539 = vmatpush1.msra.mxu0 0.0
    %540 = vmatprep.subr.mxu0 0.0
    %541 = vmatpush1.msra.mxu0 0.0
    %542 = vmatprep.subr.mxu0 0.0
    %543 = vmatpush1.msra.mxu0 0.0
    %544 = vmatprep.subr.mxu0 0.0
    %545 = vmatpush1.msra.mxu0 0.0
    %546 = vmatprep.subr.mxu0 0.0
    %547 = vmatpush1.msra.mxu0 0.0
    %548 = vmatprep.mubr.f32.mxu0 0.0
    %549 = vmatmul.mubr.f32.gmra.mrb[0].mxu0 %v479
    %v550 = vpop.f32.mrb[0].mxu0
    %v551 = vadd.f32 %v476, %v550
    %v552 = vpop.f32.mrb[0].mxu0
    %553 = vmatprep.mubr.f32.mxu0 0.0
    %554 = vmatmul.mubr.f32.gmra.mrb[0].mxu0 %v482
    %v555 = vpop.f32.mrb[0].mxu0
    %v556 = vadd.f32 %v476, %v555
    %v557 = vpop.f32.mrb[0].mxu0
    %558 = vdwg.mxu0
    %v560 = vsel %vm123, %v551, 0
    %v563 = vsel %vm123, %v203, 0
    %v566 = vsel %vm123, %v208, 0
    %568 = vmatprep.subr.mxu0 0.0
    %569 = vmatpush1.xpose.msra.mxu0 %v563
    %570 = vmatprep.subr.mxu0 0.0
    %571 = vmatpush1.xpose.msra.mxu0 %v566
    %572 = vmatprep.subr.mxu0 0.0
    %573 = vmatpush1.xpose.msra.mxu0 0.0
    %574 = vmatprep.subr.mxu0 0.0
    %575 = vmatpush1.xpose.msra.mxu0 0.0
    %576 = vmatprep.subr.mxu0 0.0
    %577 = vmatpush1.xpose.msra.mxu0 0.0
    %578 = vmatprep.subr.mxu0 0.0
    %579 = vmatpush1.xpose.msra.mxu0 0.0
    %580 = vmatprep.subr.mxu0 0.0
    %581 = vmatpush1.xpose.msra.mxu0 0.0
    %582 = vmatprep.subr.mxu0 0.0
    %583 = vmatpush1.xpose.msra.mxu0 0.0
    %584 = vmatprep.subr.mxu0 0.0
    %585 = vmatpush1.xpose.msra.mxu0 0.0
    %586 = vmatprep.subr.mxu0 0.0
    %587 = vmatpush1.xpose.msra.mxu0 0.0
    %588 = vmatprep.subr.mxu0 0.0
    %589 = vmatpush1.xpose.msra.mxu0 0.0
    %590 = vmatprep.subr.mxu0 0.0
    %591 = vmatpush1.xpose.msra.mxu0 0.0
    %592 = vmatprep.subr.mxu0 0.0
    %593 = vmatpush1.xpose.msra.mxu0 0.0
    %594 = vmatprep.subr.mxu0 0.0
    %595 = vmatpush1.xpose.msra.mxu0 0.0
    %596 = vmatprep.subr.mxu0 0.0
    %597 = vmatpush1.xpose.msra.mxu0 0.0
    %598 = vmatprep.subr.mxu0 0.0
    %599 = vmatpush1.xpose.msra.mxu0 0.0
    %600 = vmatprep.subr.mxu0 0.0
    %601 = vmatpush1.xpose.msra.mxu0 0.0
    %602 = vmatprep.subr.mxu0 0.0
    %603 = vmatpush1.xpose.msra.mxu0 0.0
    %604 = vmatprep.subr.mxu0 0.0
    %605 = vmatpush1.xpose.msra.mxu0 0.0
    %606 = vmatprep.subr.mxu0 0.0
    %607 = vmatpush1.xpose.msra.mxu0 0.0
    %608 = vmatprep.subr.mxu0 0.0
    %609 = vmatpush1.xpose.msra.mxu0 0.0
    %610 = vmatprep.subr.mxu0 0.0
    %611 = vmatpush1.xpose.msra.mxu0 0.0
    %612 = vmatprep.subr.mxu0 0.0
    %613 = vmatpush1.xpose.msra.mxu0 0.0
    %614 = vmatprep.subr.mxu0 0.0
    %615 = vmatpush1.xpose.msra.mxu0 0.0
    %616 = vmatprep.subr.mxu0 0.0
    %617 = vmatpush1.xpose.msra.mxu0 0.0
    %618 = vmatprep.subr.mxu0 0.0
    %619 = vmatpush1.xpose.msra.mxu0 0.0
    %620 = vmatprep.subr.mxu0 0.0
    %621 = vmatpush1.xpose.msra.mxu0 0.0
    %622 = vmatprep.subr.mxu0 0.0
    %623 = vmatpush1.xpose.msra.mxu0 0.0
    %624 = vmatprep.subr.mxu0 0.0
    %625 = vmatpush1.xpose.msra.mxu0 0.0
    %626 = vmatprep.subr.mxu0 0.0
    %627 = vmatpush1.xpose.msra.mxu0 0.0
    %628 = vmatprep.subr.mxu0 0.0
    %629 = vmatpush1.xpose.msra.mxu0 0.0
    %630 = vmatprep.subr.mxu0 0.0
    %631 = vmatpush1.xpose.msra.mxu0 0.0
    %632 = vmatprep.mubr.f32.mxu0 0.0
    %633 = vmatmul.mubr.f32.gmra.mrb[0].mxu0 %v560
    %v634 = vpop.f32.mrb[0].mxu0
    %v635 = vadd.f32 0.0, %v634
    %v636 = vpop.f32.mrb[0].mxu0
    %637 = vdwg.mxu0
    %v639 = vsel %vm123, %v556, 0
    %v642 = vsel %vm123, %v213, 0
    %v645 = vsel %vm123, %v218, 0
    %647 = vmatprep.subr.mxu0 0.0
    %648 = vmatpush1.xpose.msra.mxu0 %v642
    %649 = vmatprep.subr.mxu0 0.0
    %650 = vmatpush1.xpose.msra.mxu0 %v645
    %651 = vmatprep.subr.mxu0 0.0
    %652 = vmatpush1.xpose.msra.mxu0 0.0
    %653 = vmatprep.subr.mxu0 0.0
    %654 = vmatpush1.xpose.msra.mxu0 0.0
    %655 = vmatprep.subr.mxu0 0.0
    %656 = vmatpush1.xpose.msra.mxu0 0.0
    %657 = vmatprep.subr.mxu0 0.0
    %658 = vmatpush1.xpose.msra.mxu0 0.0
    %659 = vmatprep.subr.mxu0 0.0
    %660 = vmatpush1.xpose.msra.mxu0 0.0
    %661 = vmatprep.subr.mxu0 0.0
    %662 = vmatpush1.xpose.msra.mxu0 0.0
    %663 = vmatprep.subr.mxu0 0.0
    %664 = vmatpush1.xpose.msra.mxu0 0.0
    %665 = vmatprep.subr.mxu0 0.0
    %666 = vmatpush1.xpose.msra.mxu0 0.0
    %667 = vmatprep.subr.mxu0 0.0
    %668 = vmatpush1.xpose.msra.mxu0 0.0
    %669 = vmatprep.subr.mxu0 0.0
    %670 = vmatpush1.xpose.msra.mxu0 0.0
    %671 = vmatprep.subr.mxu0 0.0
    %672 = vmatpush1.xpose.msra.mxu0 0.0
    %673 = vmatprep.subr.mxu0 0.0
    %674 = vmatpush1.xpose.msra.mxu0 0.0
    %675 = vmatprep.subr.mxu0 0.0
    %676 = vmatpush1.xpose.msra.mxu0 0.0
    %677 = vmatprep.subr.mxu0 0.0
    %678 = vmatpush1.xpose.msra.mxu0 0.0
    %679 = vmatprep.subr.mxu0 0.0
    %680 = vmatpush1.xpose.msra.mxu0 0.0
    %681 = vmatprep.subr.mxu0 0.0
    %682 = vmatpush1.xpose.msra.mxu0 0.0
    %683 = vmatprep.subr.mxu0 0.0
    %684 = vmatpush1.xpose.msra.mxu0 0.0
    %685 = vmatprep.subr.mxu0 0.0
    %686 = vmatpush1.xpose.msra.mxu0 0.0
    %687 = vmatprep.subr.mxu0 0.0
    %688 = vmatpush1.xpose.msra.mxu0 0.0
    %689 = vmatprep.subr.mxu0 0.0
    %690 = vmatpush1.xpose.msra.mxu0 0.0
    %691 = vmatprep.subr.mxu0 0.0
    %692 = vmatpush1.xpose.msra.mxu0 0.0
    %693 = vmatprep.subr.mxu0 0.0
    %694 = vmatpush1.xpose.msra.mxu0 0.0
    %695 = vmatprep.subr.mxu0 0.0
    %696 = vmatpush1.xpose.msra.mxu0 0.0
    %697 = vmatprep.subr.mxu0 0.0
    %698 = vmatpush1.xpose.msra.mxu0 0.0
    %699 = vmatprep.subr.mxu0 0.0
    %700 = vmatpush1.xpose.msra.mxu0 0.0
    %701 = vmatprep.subr.mxu0 0.0
    %702 = vmatpush1.xpose.msra.mxu0 0.0
    %703 = vmatprep.subr.mxu0 0.0
    %704 = vmatpush1.xpose.msra.mxu0 0.0
    %705 = vmatprep.subr.mxu0 0.0
    %706 = vmatpush1.xpose.msra.mxu0 0.0
    %707 = vmatprep.subr.mxu0 0.0
    %708 = vmatpush1.xpose.msra.mxu0 0.0
    %709 = vmatprep.subr.mxu0 0.0
    %710 = vmatpush1.xpose.msra.mxu0 0.0
    %711 = vmatprep.mubr.f32.mxu0 0.0
    %712 = vmatmul.mubr.f32.gmra.mrb[0].mxu0 %v639
    %v713 = vpop.f32.mrb[0].mxu0
    %v714 = vadd.f32 0.0, %v713
    %v715 = vpop.f32.mrb[0].mxu0
    %716 = vdwg.mxu0
    %vm717 = vcmask 130048
    %v718 = vsel %vm717, %v635, -inf
    %719 = vmax.xlane.f32.xlu0 %v718
    %v720 = vpop.xlane.xlu0 %719
    %v721 = vsel %vm717, %v714, -inf
    %722 = vmax.xlane.f32.xlu0 %v721
    %v723 = vpop.xlane.xlu0 %722
    %v724 = vsub.f32 %v635, %v720
    %v725 = vsub.f32 %v714, %v723
    %v726 = vmul.f32 %v724, 1.442695
    %v727 = vpow.pop %v726
    %v728 = vmul.f32 %v725, 1.442695
    %v729 = vpow.pop %v728
    %v730 = vsel %vm717, %v727, 0.0
    %731 = vadd.xlane.f32.xlu0 %v730
    %v732 = vpop.xlane.xlu0 %731
    %v733 = vsel %vm717, %v729, 0.0
    %734 = vadd.xlane.f32.xlu0 %v733
    %v735 = vpop.xlane.xlu0 %734
    %v736 = vrcp.pop %v732
    %v737 = vmul.f32 %v727, %v736
    %v738 = vrcp.pop %v735
    %v739 = vmul.f32 %v729, %v738
    %v741 = vsel %vm717, %v737, 0
    %743 = vmatprep.subr.mxu0 0.0
    %744 = vmatpush1.msra.mxu0 %v203
    %745 = vmatprep.subr.mxu0 0.0
    %746 = vmatpush1.msra.mxu0 %v208
    %747 = vmatprep.subr.mxu0 0.0
    %748 = vmatpush1.msra.mxu0 0.0
    %749 = vmatprep.subr.mxu0 0.0
    %750 = vmatpush1.msra.mxu0 0.0
    %751 = vmatprep.subr.mxu0 0.0
    %752 = vmatpush1.msra.mxu0 0.0
    %753 = vmatprep.subr.mxu0 0.0
    %754 = vmatpush1.msra.mxu0 0.0
    %755 = vmatprep.subr.mxu0 0.0
    %756 = vmatpush1.msra.mxu0 0.0
    %757 = vmatprep.subr.mxu0 0.0
    %758 = vmatpush1.msra.mxu0 0.0
    %759 = vmatprep.subr.mxu0 0.0
    %760 = vmatpush1.msra.mxu0 0.0
    %761 = vmatprep.subr.mxu0 0.0
    %762 = vmatpush1.msra.mxu0 0.0
    %763 = vmatprep.subr.mxu0 0.0
    %764 = vmatpush1.msra.mxu0 0.0
    %765 = vmatprep.subr.mxu0 0.0
    %766 = vmatpush1.msra.mxu0 0.0
    %767 = vmatprep.subr.mxu0 0.0
    %768 = vmatpush1.msra.mxu0 0.0
    %769 = vmatprep.subr.mxu0 0.0
    %770 = vmatpush1.msra.mxu0 0.0
    %771 = vmatprep.subr.mxu0 0.0
    %772 = vmatpush1.msra.mxu0 0.0
    %773 = vmatprep.subr.mxu0 0.0
    %774 = vmatpush1.msra.mxu0 0.0
    %775 = vmatprep.subr.mxu0 0.0
    %776 = vmatpush1.msra.mxu0 0.0
    %777 = vmatprep.subr.mxu0 0.0
    %778 = vmatpush1.msra.mxu0 0.0
    %779 = vmatprep.subr.mxu0 0.0
    %780 = vmatpush1.msra.mxu0 0.0
    %781 = vmatprep.subr.mxu0 0.0
    %782 = vmatpush1.msra.mxu0 0.0
    %783 = vmatprep.subr.mxu0 0.0
    %784 = vmatpush1.msra.mxu0 0.0
    %785 = vmatprep.subr.mxu0 0.0
    %786 = vmatpush1.msra.mxu0 0.0
    %787 = vmatprep.subr.mxu0 0.0
    %788 = vmatpush1.msra.mxu0 0.0
    %789 = vmatprep.subr.mxu0 0.0
    %790 = vmatpush1.msra.mxu0 0.0
    %791 = vmatprep.subr.mxu0 0.0
    %792 = vmatpush1.msra.mxu0 0.0
    %793 = vmatprep.subr.mxu0 0.0
    %794 = vmatpush1.msra.mxu0 0.0
    %795 = vmatprep.subr.mxu0 0.0
    %796 = vmatpush1.msra.mxu0 0.0
    %797 = vmatprep.subr.mxu0 0.0
    %798 = vmatpush1.msra.mxu0 0.0
    %799 = vmatprep.subr.mxu0 0.0
    %800 = vmatpush1.msra.mxu0 0.0
    %801 = vmatprep.subr.mxu0 0.0
    %802 = vmatpush1.msra.mxu0 0.0
    %803 = vmatprep.subr.mxu0 0.0
    %804 = vmatpush1.msra.mxu0 0.0
    %805 = vmatprep.subr.mxu0 0.0
    %806 = vmatpush1.msra.mxu0 0.0
    %807 = vmatprep.mubr.f32.mxu0 0.0
    %808 = vmatmul.mubr.f32.gmra.mrb[0].mxu0 %v741
    %v809 = vpop.f32.mrb[0].mxu0
    %v810 = vadd.f32 0.0, %v809
    %v811 = vpop.f32.mrb[0].mxu0
    %812 = vdwg.mxu0
    %v814 = vsel %vm717, %v739, 0
    %816 = vmatprep.subr.mxu0 0.0
    %817 = vmatpush1.msra.mxu0 %v213
    %818 = vmatprep.subr.mxu0 0.0
    %819 = vmatpush1.msra.mxu0 %v218
    %820 = vmatprep.subr.mxu0 0.0
    %821 = vmatpush1.msra.mxu0 0.0
    %822 = vmatprep.subr.mxu0 0.0
    %823 = vmatpush1.msra.mxu0 0.0
    %824 = vmatprep.subr.mxu0 0.0
    %825 = vmatpush1.msra.mxu0 0.0
    %826 = vmatprep.subr.mxu0 0.0
    %827 = vmatpush1.msra.mxu0 0.0
    %828 = vmatprep.subr.mxu0 0.0
    %829 = vmatpush1.msra.mxu0 0.0
    %830 = vmatprep.subr.mxu0 0.0
    %831 = vmatpush1.msra.mxu0 0.0
    %832 = vmatprep.subr.mxu0 0.0
    %833 = vmatpush1.msra.mxu0 0.0
    %834 = vmatprep.subr.mxu0 0.0
    %835 = vmatpush1.msra.mxu0 0.0
    %836 = vmatprep.subr.mxu0 0.0
    %837 = vmatpush1.msra.mxu0 0.0
    %838 = vmatprep.subr.mxu0 0.0
    %839 = vmatpush1.msra.mxu0 0.0
    %840 = vmatprep.subr.mxu0 0.0
    %841 = vmatpush1.msra.mxu0 0.0
    %842 = vmatprep.subr.mxu0 0.0
    %843 = vmatpush1.msra.mxu0 0.0
    %844 = vmatprep.subr.mxu0 0.0
    %845 = vmatpush1.msra.mxu0 0.0
    %846 = vmatprep.subr.mxu0 0.0
    %847 = vmatpush1.msra.mxu0 0.0
    %848 = vmatprep.subr.mxu0 0.0
    %849 = vmatpush1.msra.mxu0 0.0
    %850 = vmatprep.subr.mxu0 0.0
    %851 = vmatpush1.msra.mxu0 0.0
    %852 = vmatprep.subr.mxu0 0.0
    %853 = vmatpush1.msra.mxu0 0.0
    %854 = vmatprep.subr.mxu0 0.0
    %855 = vmatpush1.msra.mxu0 0.0
    %856 = vmatprep.subr.mxu0 0.0
    %857 = vmatpush1.msra.mxu0 0.0
    %858 = vmatprep.subr.mxu0 0.0
    %859 = vmatpush1.msra.mxu0 0.0
    %860 = vmatprep.subr.mxu0 0.0
    %861 = vmatpush1.msra.mxu0 0.0
    %862 = vmatprep.subr.mxu0 0.0
    %863 = vmatpush1.msra.mxu0 0.0
    %864 = vmatprep.subr.mxu0 0.0
    %865 = vmatpush1.msra.mxu0 0.0
    %866 = vmatprep.subr.mxu0 0.0
    %867 = vmatpush1.msra.mxu0 0.0
    %868 = vmatprep.subr.mxu0 0.0
    %869 = vmatpush1.msra.mxu0 0.0
    %870 = vmatprep.subr.mxu0 0.0
    %871 = vmatpush1.msra.mxu0 0.0
    %872 = vmatprep.subr.mxu0 0.0
    %873 = vmatpush1.msra.mxu0 0.0
    %874 = vmatprep.subr.mxu0 0.0
    %875 = vmatpush1.msra.mxu0 0.0
    %876 = vmatprep.subr.mxu0 0.0
    %877 = vmatpush1.msra.mxu0 0.0
    %878 = vmatprep.subr.mxu0 0.0
    %879 = vmatpush1.msra.mxu0 0.0
    %880 = vmatprep.mubr.f32.mxu0 0.0
    %881 = vmatmul.mubr.f32.gmra.mrb[0].mxu0 %v814
    %v882 = vpop.f32.mrb[0].mxu0
    %v883 = vadd.f32 0.0, %v882
    %v884 = vpop.f32.mrb[0].mxu0
    %885 = vdwg.mxu0
    %v886 = vadd.f32 %v110, %v810
    %v887 = vadd.f32 %v111, %v883
    %v888 = vld [vmem:[#allocation9] sm:$0xff]
    %v889 = vld [vmem:[#allocation9 + $0x8] sm:$0xff]
    %v890 = vld [vmem:[#allocation9 + $0x10] sm:$0xff]
    %v891 = vld [vmem:[#allocation9 + $0x18] sm:$0xff]
    %v892 = vld [vmem:[%s10] sm:$0x1]
    %v894 = vlaneseq
    %v895 = vshrl.u32 %v894, 7
    %v896 = vsub.s32 0, %v895
    %v897 = vrot.slane %v892, %v896
    %v900 = vsel %vm123, %v886, 0
    %v903 = vsel %vm123, %v887, 0
    %905 = vmatprep.subr.mxu0 0.0
    %906 = vmatpush1.msra.mxu0 %v888
    %907 = vmatprep.subr.mxu0 0.0
    %908 = vmatpush1.msra.mxu0 %v889
    %909 = vmatprep.subr.mxu0 0.0
    %910 = vmatpush1.msra.mxu0 %v890
    %911 = vmatprep.subr.mxu0 0.0
    %912 = vmatpush1.msra.mxu0 %v891
    %913 = vmatprep.subr.mxu0 0.0
    %914 = vmatpush1.msra.mxu0 0.0
    %915 = vmatprep.subr.mxu0 0.0
    %916 = vmatpush1.msra.mxu0 0.0
    %917 = vmatprep.subr.mxu0 0.0
    %918 = vmatpush1.msra.mxu0 0.0
    %919 = vmatprep.subr.mxu0 0.0
    %920 = vmatpush1.msra.mxu0 0.0
    %921 = vmatprep.subr.mxu0 0.0
    %922 = vmatpush1.msra.mxu0 0.0
    %923 = vmatprep.subr.mxu0 0.0
    %924 = vmatpush1.msra.mxu0 0.0
    %925 = vmatprep.subr.mxu0 0.0
    %926 = vmatpush1.msra.mxu0 0.0
    %927 = vmatprep.subr.mxu0 0.0
    %928 = vmatpush1.msra.mxu0 0.0
    %929 = vmatprep.subr.mxu0 0.0
    %930 = vmatpush1.msra.mxu0 0.0
    %931 = vmatprep.subr.mxu0 0.0
    %932 = vmatpush1.msra.mxu0 0.0
    %933 = vmatprep.subr.mxu0 0.0
    %934 = vmatpush1.msra.mxu0 0.0
    %935 = vmatprep.subr.mxu0 0.0
    %936 = vmatpush1.msra.mxu0 0.0
    %937 = vmatprep.subr.mxu0 0.0
    %938 = vmatpush1.msra.mxu0 0.0
    %939 = vmatprep.subr.mxu0 0.0
    %940 = vmatpush1.msra.mxu0 0.0
    %941 = vmatprep.subr.mxu0 0.0
    %942 = vmatpush1.msra.mxu0 0.0
    %943 = vmatprep.subr.mxu0 0.0
    %944 = vmatpush1.msra.mxu0 0.0
    %945 = vmatprep.subr.mxu0 0.0
    %946 = vmatpush1.msra.mxu0 0.0
    %947 = vmatprep.subr.mxu0 0.0
    %948 = vmatpush1.msra.mxu0 0.0
    %949 = vmatprep.subr.mxu0 0.0
    %950 = vmatpush1.msra.mxu0 0.0
    %951 = vmatprep.subr.mxu0 0.0
    %952 = vmatpush1.msra.mxu0 0.0
    %953 = vmatprep.subr.mxu0 0.0
    %954 = vmatpush1.msra.mxu0 0.0
    %955 = vmatprep.subr.mxu0 0.0
    %956 = vmatpush1.msra.mxu0 0.0
    %957 = vmatprep.subr.mxu0 0.0
    %958 = vmatpush1.msra.mxu0 0.0
    %959 = vmatprep.subr.mxu0 0.0
    %960 = vmatpush1.msra.mxu0 0.0
    %961 = vmatprep.subr.mxu0 0.0
    %962 = vmatpush1.msra.mxu0 0.0
    %963 = vmatprep.subr.mxu0 0.0
    %964 = vmatpush1.msra.mxu0 0.0
    %965 = vmatprep.subr.mxu0 0.0
    %966 = vmatpush1.msra.mxu0 0.0
    %967 = vmatprep.subr.mxu0 0.0
    %968 = vmatpush1.msra.mxu0 0.0
    %969 = vmatprep.mubr.f32.mxu0 0.0
    %970 = vmatmul.mubr.f32.gmra.mrb[0].mxu0 %v900
    %v971 = vpop.f32.mrb[0].mxu0
    %v972 = vadd.f32 %v897, %v971
    %v973 = vpop.f32.mrb[0].mxu0
    %974 = vmatprep.mubr.f32.mxu0 0.0
    %975 = vmatmul.mubr.f32.gmra.mrb[0].mxu0 %v903
    %v976 = vpop.f32.mrb[0].mxu0
    %v977 = vadd.f32 %v897, %v976
    %v978 = vpop.f32.mrb[0].mxu0
    %979 = vdwg.mxu0
    %980 = vmax.xlane.f32.xlu0 %v972
    %v981 = vpop.xlane.xlu0 %980
    %982 = vmax.xlane.f32.xlu0 %v977
    %v983 = vpop.xlane.xlu0 %982
    %v984 = vsub.f32 %v972, %v981
    %v985 = vsub.f32 %v977, %v983
    %v986 = vmul.f32 %v984, 1.442695
    %v987 = vpow.pop %v986
    %v988 = vmul.f32 %v985, 1.442695
    %v989 = vpow.pop %v988
    %990 = vadd.xlane.f32.xlu0 %v987
    %v991 = vpop.xlane.xlu0 %990
    %992 = vadd.xlane.f32.xlu0 %v989
    %v993 = vpop.xlane.xlu0 %992
    %v994 = vmul.f32 %v991, 0.5
    %v995 = vmul.f32 %v993, 0.5
    %v996 = vrcp.pop %v994
    %v997 = vmul.f32 %v987, %v996
    %v998 = vrcp.pop %v995
    %v999 = vmul.f32 %v989, %v998
    %vm1000 = vcmp.lt.s32.totalorder %v397, 64
    %v1001 = vsel %vm1000, %v972, %v997
    %v1002 = vsel %vm1000, %v977, %v999
    %v1003 = vsel %vm717, %v737, 0.0
    %v1004 = vsel %vm717, %v739, 0.0
    %1005 = vst [vmem:[%s11] sm:$0xff] %v1001
    %1006 = vst [vmem:[%s11 + $0x8] sm:$0xff] %v1003
    %1007 = vst [vmem:[%s11 + $0x10] sm:$0xff] %v1002
    %1008 = vst [vmem:[%s11 + $0x18] sm:$0xff] %v1004
    %1010 = vrot.lane.b32.xlu0 %v383, 16
    %v1011 = vpop.permute.xlu0 %1010
    %v1013 = vadd.s32 %v397, 4294967266
    %v1014 = vlaneseq
    %v1015 = vshrl.u32 %v1014, 7
    %v1016 = vsub.s32 %v1013, %v1015
    %v1017 = vrot.slane %v392, %v1016
    %v1018 = vlaneseq
    %v1019 = vshrl.u32 %v1018, 7
    %v1020 = vsub.s32 %v1013, %v1019
    %v1021 = vrot.slane %v393, %v1020
    %v1022 = vsel %vm376, %v1021, %v1017
    %1026 = vset.pattern.permute.xlu0 0
    %1027 = vperm.xlu0 %1026, %v464
    %v1028 = vpop.permute.xlu0 %1027
    %1029 = vset.pattern.permute.xlu0 0
    %1030 = vperm.xlu0 %1029, %v466
    %v1031 = vpop.permute.xlu0 %1030
    %v1032 = vadd.s32 %v397, 4294967264
    %v1033 = vlaneseq
    %v1034 = vshrl.u32 %v1033, 7
    %v1035 = vsub.s32 %v1032, %v1034
    %v1036 = vrot.slane %v1028, %v1035
    %v1037 = vlaneseq
    %v1038 = vshrl.u32 %v1037, 7
    %v1039 = vsub.s32 %v1032, %v1038
    %v1040 = vrot.slane %v1031, %v1039
    %v1041 = vsel %vm376, %v1040, %v1036
    %v1043 = vsel %vm717, %v379, %v1011
    %v1044 = vsel %vm123, %v1043, %v1022
    %vm1045 = vcmask 277504
    %v1046 = vsel %vm1045, %v1044, %v1041
    %vm1047 = vcmask 293888
    %v1048 = vsel %vm1047, %v1046, 0.0
    %1049 = vst [vmem:[%s12] sm:$0x3] %v1048
    // Predicated region
    $region66: #{qa_output_generator.1} parent=1 // pred_check
      _
    $region67: #{qa_output_generator.1} parent=1 // pred_check_branch
      %1051 = sbr.rel (0) target = $region69
    $region68: #{qa_output_generator.1} parent=1 // pred_region
      _
    $region69: #{qa_output_generator.1} parent=1 // pred_fallthru
      _
    // Predicated region
    $region70: #{qa_output_generator.1} parent=1 // pred_check
      _
    $region71: #{qa_output_generator.1} parent=1 // pred_check_branch
      %1053 = sbr.rel (0) target = $region73
    $region72: #{qa_output_generator.1} parent=1 // pred_region
      _
    $region73: #{qa_output_generator.1} parent=1 // pred_fallthru
      _
    // Predicated region
    $region74: #{qa_output_generator.1} parent=1 // pred_check
      _
    $region75: #{qa_output_generator.1} parent=1 // pred_check_branch
      %1055 = sbr.rel (0) target = $region77
    $region76: #{qa_output_generator.1} parent=1 // pred_region
      _
    $region77: #{qa_output_generator.1} parent=1 // pred_fallthru
      _
    // Predicated region
    $region78: #{qa_output_generator.1} parent=1 // pred_check
      _
    $region79: #{qa_output_generator.1} parent=1 // pred_check_branch
      %1057 = sbr.rel (0) target = $region81
    $region80: #{qa_output_generator.1} parent=1 // pred_region
      _
    $region81: #{qa_output_generator.1} parent=1 // pred_fallthru
      _
    %1058 = vsyncpa [#allocation3], 1
    %1059 = vsyncpa [#allocation5], 1
    %1060 = vsyncpa [#allocation8], 1

</llo_original>
